<compile_context>
chip_gen: v6e
topology: v6e:2x2x1
jax: 0.10.0
libtpu: 0.0.40
codegen_flags: <defaults>
</compile_context>

<pallas_src>
import functools

import jax
import jax.numpy as jnp
from jax.experimental import pallas as pl
from jax.experimental.pallas import tpu as pltpu

LANE = 128
ROW_ALIGN = 16            # covers bf16 sublane packing for the output tile
HIDDEN = (512, 256, 128)


def _round_up(x, m):
    return ((x + m - 1) // m) * m


def mlp_kernel(x_ref,
               w1_ref, b1_ref,
               w2_ref, b2_ref,
               w3_ref, b3_ref,
               w4_ref, b4_ref,
               out_ref):
    # x tile: (tile_n, in_f). Cast to bf16 for the MXU only if needed.
    x = x_ref[...]
    if x.dtype != jnp.bfloat16:
        x = x.astype(jnp.bfloat16)

    h1 = jnp.dot(x, w1_ref[...], preferred_element_type=jnp.float32) + b1_ref[...]
    h1 = jnp.maximum(h1, 0.0).astype(jnp.bfloat16)

    h2 = jnp.dot(h1, w2_ref[...], preferred_element_type=jnp.float32) + b2_ref[...]
    h2 = jnp.maximum(h2, 0.0).astype(jnp.bfloat16)

    h3 = jnp.dot(h2, w3_ref[...], preferred_element_type=jnp.float32) + b3_ref[...]
    h3 = jnp.maximum(h3, 0.0).astype(jnp.bfloat16)

    logits = jnp.dot(h3, w4_ref[...], preferred_element_type=jnp.float32) + b4_ref[...]
    out_ref[...] = logits.astype(out_ref.dtype)   # lane-dense (tile, 128) bf16 store


def prepare_params(params):
    """One-time weight prep, hoisted out of the forward path.

    Casts weights to bf16 (MXU native) keeping biases in f32, and zero-pads
    the final layer to 128 output lanes so the kernel's output store is an
    unmasked, lane-dense vst.  Returns (prepped_arrays, out_features).
    """
    (w1, b1), (w2, b2), (w3, b3), (w4, b4) = params
    out_f = int(w4.shape[1])
    out_pad = _round_up(out_f, LANE)

    w4p = jnp.zeros((w4.shape[0], out_pad), w4.dtype).at[:, :out_f].set(w4)
    b4p = jnp.zeros((1, out_pad), b4.dtype).at[:, :out_f].set(b4)

    def _wb(w, b):
        return w.astype(jnp.bfloat16), b.reshape(1, -1).astype(jnp.float32)

    prepped = (*_wb(w1, b1), *_wb(w2, b2), *_wb(w3, b3), *_wb(w4p, b4p))
    return prepped, out_f


@functools.partial(
    jax.jit,
    static_argnames=("out_features", "tile_n", "vmem_budget_bytes", "core_parallel"))
def pytorch_ann_forward(x, prepped, out_features, *, tile_n=2048,
                        vmem_budget_bytes=48 * 1024 * 1024,
                        core_parallel=False):
    """Fused MLP forward. x: (N, inputSize) f32 or bf16 -> (N, outputSize) f32."""
    w1b, b1f, w2b, b2f, w3b, b3f, w4b, b4f = prepped
    N, in_f = x.shape
    out_pad = w4b.shape[1]

    # ---- tile selection: as big as fits the per-generation VMEM budget ----
    # per-row bytes: x tile (2 pipeline bufs) + bf16 out tile (2 bufs) +
    # f32/bf16 intermediates (h1..h3, logits) inside the body (rough).
    row_bytes = (2 * in_f * x.dtype.itemsize
                 + 2 * 2 * out_pad
                 + 8 * 1024)
    weight_bytes = sum(int(a.size) * a.dtype.itemsize for a in prepped)
    avail = max(vmem_budget_bytes - 2 * weight_bytes, row_bytes * ROW_ALIGN)
    max_tile = max(ROW_ALIGN, (avail // row_bytes) // ROW_ALIGN * ROW_ALIGN)

    tile = min(tile_n, max_tile, _round_up(N, ROW_ALIGN))
    tile = max(ROW_ALIGN, _round_up(tile, ROW_ALIGN))

    n_pad = _round_up(N, tile)
    if n_pad != N:
        x = jnp.pad(x, ((0, n_pad - N), (0, 0)))
    grid = (pl.cdiv(n_pad, tile),)

    def resident(shape):
        # Same full block every grid step -> stays VMEM-resident, DMA'd once.
        return pl.BlockSpec(shape, lambda i: (0,) * len(shape))

    flops = 2 * n_pad * (in_f * HIDDEN[0] + HIDDEN[0] * HIDDEN[1]
                         + HIDDEN[1] * HIDDEN[2] + HIDDEN[2] * out_pad)
    bytes_accessed = (n_pad * in_f * x.dtype.itemsize   # x stream
                      + n_pad * out_pad * 2             # bf16 logits writeback
                      + weight_bytes)                   # weights, once

    batch_sem = pltpu.CORE_PARALLEL if core_parallel else "parallel"

    out = pl.pallas_call(
        mlp_kernel,
        out_shape=jax.ShapeDtypeStruct((n_pad, out_pad), jnp.bfloat16),
        grid_spec=pl.GridSpec(
            grid=grid,
            in_specs=[
                pl.BlockSpec((tile, in_f), lambda i: (i, 0)),   # x batch tile
                resident(w1b.shape), resident(b1f.shape),
                resident(w2b.shape), resident(b2f.shape),
                resident(w3b.shape), resident(b3f.shape),
                resident(w4b.shape), resident(b4f.shape),
            ],
            out_specs=pl.BlockSpec((tile, out_pad), lambda i: (i, 0)),
        ),
        compiler_params=pltpu.CompilerParams(
            dimension_semantics=(batch_sem,),
            # raise scoped VMEM above the 16/32 MiB defaults; stays < 64 MiB
            # physical on v7x.
            vmem_limit_bytes=int(min(vmem_budget_bytes + (8 << 20), 100 << 20)),
        ),
        cost_estimate=pl.CostEstimate(flops=int(flops), transcendentals=0,
                                      bytes_accessed=int(bytes_accessed)),
    )(x, *prepped)

    # Slice off batch/lane padding and upcast; fuses with the slice copy.
    return out[:N, :out_features].astype(jnp.float32)


def init_params(key, input_size, output_size, hidden=HIDDEN):
    """Deterministic init mimicking torch.nn.Linear default (U(+/- 1/sqrt(fan_in)))."""
    sizes = [input_size, *hidden, output_size]
    params = []
    for fan_in, fan_out in zip(sizes[:-1], sizes[1:]):
        key, kw, kb = jax.random.split(key, 3)
        bound = 1.0 / jnp.sqrt(jnp.float32(fan_in))
        w = jax.random.uniform(kw, (fan_in, fan_out), jnp.float32, -bound, bound)
        b = jax.random.uniform(kb, (1, fan_out), jnp.float32, -bound, bound)
        params.append((w, b))
    return params


def reference_forward(x, params, *, matmul_dtype=jnp.float32, out_store_dtype=None):
    """Pure-JAX reference. matmul_dtype / out_store_dtype mirror the kernel precision."""
    h = x
    for i, (w, b) in enumerate(params):
        h = jnp.dot(h.astype(matmul_dtype), w.astype(matmul_dtype),
                    preferred_element_type=jnp.float32) + b.astype(jnp.float32)
        if i < len(params) - 1:
            h = jnp.maximum(h, 0.0)
    if out_store_dtype is not None:
        h = h.astype(out_store_dtype).astype(jnp.float32)
    return h


if __name__ == "__main__":
    # Small shapes consistent with the module: batch=8, inputSize=256, outputSize=10.
    INPUT_SIZE = 256
    OUTPUT_SIZE = 10
    BATCH = 8

    key = jax.random.PRNGKey(0)
    key, kx = jax.random.split(key)
    x = jax.random.normal(kx, (BATCH, INPUT_SIZE), jnp.float32)

    params = init_params(key, INPUT_SIZE, OUTPUT_SIZE)
    prepped, out_f = prepare_params(params)          # one-time weight prep

    logits = pytorch_ann_forward(x, prepped, out_f)
    logits = jax.block_until_ready(logits)
    assert logits.shape == (BATCH, OUTPUT_SIZE)
    assert logits.dtype == jnp.float32

    # Precision-matched reference (bf16 matmul inputs, f32 accumulate, bf16 store).
    ref_match = reference_forward(x, params, matmul_dtype=jnp.bfloat16,
                                  out_store_dtype=jnp.bfloat16)
    assert jnp.allclose(logits, ref_match, atol=2e-2, rtol=2e-2), \
        "mismatch vs bf16-matched JAX reference"

    # Loose sanity check against the full-f32 reference (bf16 rounding slack).
    ref_f32 = reference_forward(x, params, matmul_dtype=jnp.float32)
    assert jnp.allclose(logits, ref_f32, atol=6e-2, rtol=6e-2), \
        "mismatch vs f32 JAX reference"

    print("KERNEL_OK")
</pallas_src>

<mosaic_0001>
module attributes {stable_mosaic.version = 11 : i64} {
  func.func @mlp_kernel(%arg0: i32, %arg1: memref<16x256xf32, #tpu.memory_space<vmem>>, %arg2: memref<256x512xbf16, #tpu.memory_space<vmem>>, %arg3: memref<1x512xf32, #tpu.memory_space<vmem>>, %arg4: memref<512x256xbf16, #tpu.memory_space<vmem>>, %arg5: memref<1x256xf32, #tpu.memory_space<vmem>>, %arg6: memref<256x128xbf16, #tpu.memory_space<vmem>>, %arg7: memref<1x128xf32, #tpu.memory_space<vmem>>, %arg8: memref<128x128xbf16, #tpu.memory_space<vmem>>, %arg9: memref<1x128xf32, #tpu.memory_space<vmem>>, %arg10: memref<16x128xbf16, #tpu.memory_space<vmem>>) attributes {dimension_semantics = [#tpu.dimension_semantics<parallel>], iteration_bounds = array<i64: 1>, scalar_prefetch = 0 : i64, scratch_operands = 0 : i64, tpu.core_type = #tpu.core_type<tc>, window_params = [{transform_indices = @transform_0, window_bounds = array<i64: 16, 256>}, {pipeline_mode = #tpu.pipeline_mode<synchronous>, transform_indices = @transform_1, window_bounds = array<i64: 256, 512>}, {pipeline_mode = #tpu.pipeline_mode<synchronous>, transform_indices = @transform_2, window_bounds = array<i64: 1, 512>}, {pipeline_mode = #tpu.pipeline_mode<synchronous>, transform_indices = @transform_3, window_bounds = array<i64: 512, 256>}, {pipeline_mode = #tpu.pipeline_mode<synchronous>, transform_indices = @transform_4, window_bounds = array<i64: 1, 256>}, {pipeline_mode = #tpu.pipeline_mode<synchronous>, transform_indices = @transform_5, window_bounds = array<i64: 256, 128>}, {pipeline_mode = #tpu.pipeline_mode<synchronous>, transform_indices = @transform_6, window_bounds = array<i64: 1, 128>}, {pipeline_mode = #tpu.pipeline_mode<synchronous>, transform_indices = @transform_7, window_bounds = array<i64: 128, 128>}, {pipeline_mode = #tpu.pipeline_mode<synchronous>, transform_indices = @transform_8, window_bounds = array<i64: 1, 128>}, {transform_indices = @transform_9, window_bounds = array<i64: 16, 128>}]} {
    %c0 = arith.constant 0 : index
    %c0_0 = arith.constant 0 : index
    %0 = vector.load %arg1[%c0, %c0_0] : memref<16x256xf32, #tpu.memory_space<vmem>>, vector<16x256xf32>
    %1 = arith.truncf %0 : vector<16x256xf32> to vector<16x256xbf16>
    %c0_1 = arith.constant 0 : index
    %c0_2 = arith.constant 0 : index
    %2 = vector.load %arg2[%c0_1, %c0_2] : memref<256x512xbf16, #tpu.memory_space<vmem>>, vector<256x512xbf16>
    %cst = arith.constant dense<0.000000e+00> : vector<16x512xf32>
    %3 = tpu.matmul %1, %2, %cst {dimension_numbers = #tpu.dot_dimension_numbers<[1], [0], [0], [1], [0, 0, 1, 1], [], []>} : vector<16x256xbf16>, vector<256x512xbf16>, vector<16x512xf32> -> vector<16x512xf32>
    %c0_3 = arith.constant 0 : index
    %c0_4 = arith.constant 0 : index
    %4 = vector.load %arg3[%c0_3, %c0_4] : memref<1x512xf32, #tpu.memory_space<vmem>>, vector<1x512xf32>
    %5 = vector.broadcast %4 : vector<1x512xf32> to vector<16x512xf32>
    %6 = arith.addf %3, %5 : vector<16x512xf32>
    %cst_5 = arith.constant 0.000000e+00 : f32
    %7 = vector.broadcast %cst_5 : f32 to vector<16x512xf32>
    %8 = arith.maximumf %6, %7 : vector<16x512xf32>
    %9 = arith.truncf %8 : vector<16x512xf32> to vector<16x512xbf16>
    %c0_6 = arith.constant 0 : index
    %c0_7 = arith.constant 0 : index
    %10 = vector.load %arg4[%c0_6, %c0_7] : memref<512x256xbf16, #tpu.memory_space<vmem>>, vector<512x256xbf16>
    %cst_8 = arith.constant dense<0.000000e+00> : vector<16x256xf32>
    %11 = tpu.matmul %9, %10, %cst_8 {dimension_numbers = #tpu.dot_dimension_numbers<[1], [0], [0], [1], [0, 0, 1, 1], [], []>} : vector<16x512xbf16>, vector<512x256xbf16>, vector<16x256xf32> -> vector<16x256xf32>
    %c0_9 = arith.constant 0 : index
    %c0_10 = arith.constant 0 : index
    %12 = vector.load %arg5[%c0_9, %c0_10] : memref<1x256xf32, #tpu.memory_space<vmem>>, vector<1x256xf32>
    %13 = vector.broadcast %12 : vector<1x256xf32> to vector<16x256xf32>
    %14 = arith.addf %11, %13 : vector<16x256xf32>
    %cst_11 = arith.constant 0.000000e+00 : f32
    %15 = vector.broadcast %cst_11 : f32 to vector<16x256xf32>
    %16 = arith.maximumf %14, %15 : vector<16x256xf32>
    %17 = arith.truncf %16 : vector<16x256xf32> to vector<16x256xbf16>
    %c0_12 = arith.constant 0 : index
    %c0_13 = arith.constant 0 : index
    %18 = vector.load %arg6[%c0_12, %c0_13] : memref<256x128xbf16, #tpu.memory_space<vmem>>, vector<256x128xbf16>
    %cst_14 = arith.constant dense<0.000000e+00> : vector<16x128xf32>
    %19 = tpu.matmul %17, %18, %cst_14 {dimension_numbers = #tpu.dot_dimension_numbers<[1], [0], [0], [1], [0, 0, 1, 1], [], []>} : vector<16x256xbf16>, vector<256x128xbf16>, vector<16x128xf32> -> vector<16x128xf32>
    %c0_15 = arith.constant 0 : index
    %c0_16 = arith.constant 0 : index
    %20 = vector.load %arg7[%c0_15, %c0_16] : memref<1x128xf32, #tpu.memory_space<vmem>>, vector<1x128xf32>
    %21 = vector.broadcast %20 : vector<1x128xf32> to vector<16x128xf32>
    %22 = arith.addf %19, %21 : vector<16x128xf32>
    %cst_17 = arith.constant 0.000000e+00 : f32
    %23 = vector.broadcast %cst_17 : f32 to vector<16x128xf32>
    %24 = arith.maximumf %22, %23 : vector<16x128xf32>
    %25 = arith.truncf %24 : vector<16x128xf32> to vector<16x128xbf16>
    %c0_18 = arith.constant 0 : index
    %c0_19 = arith.constant 0 : index
    %26 = vector.load %arg8[%c0_18, %c0_19] : memref<128x128xbf16, #tpu.memory_space<vmem>>, vector<128x128xbf16>
    %cst_20 = arith.constant dense<0.000000e+00> : vector<16x128xf32>
    %27 = tpu.matmul %25, %26, %cst_20 {dimension_numbers = #tpu.dot_dimension_numbers<[1], [0], [0], [1], [0, 0, 1, 1], [], []>} : vector<16x128xbf16>, vector<128x128xbf16>, vector<16x128xf32> -> vector<16x128xf32>
    %c0_21 = arith.constant 0 : index
    %c0_22 = arith.constant 0 : index
    %28 = vector.load %arg9[%c0_21, %c0_22] : memref<1x128xf32, #tpu.memory_space<vmem>>, vector<1x128xf32>
    %29 = vector.broadcast %28 : vector<1x128xf32> to vector<16x128xf32>
    %30 = arith.addf %27, %29 : vector<16x128xf32>
    %31 = arith.truncf %30 : vector<16x128xf32> to vector<16x128xbf16>
    %c0_23 = arith.constant 0 : index
    %c0_24 = arith.constant 0 : index
    %32 = vector.load %arg10[%c0_23, %c0_24] : memref<16x128xbf16, #tpu.memory_space<vmem>>, vector<16x128xbf16>
    tpu.vector_store %arg10[%c0_23, %c0_24], %31 {strides = array<i32>} : memref<16x128xbf16, #tpu.memory_space<vmem>>, vector<16x128xbf16>,
    return
  }
  func.func @transform_0(%arg0: i32) -> (i32, i32) {
    %c0_i32 = arith.constant 0 : i32
    %c0_i32_0 = arith.constant 0 : i32
    return %arg0, %c0_i32 : i32, i32
  }
  func.func @transform_1(%arg0: i32) -> (i32, i32) {
    %c0_i32 = arith.constant 0 : i32
    %c0_i32_0 = arith.constant 0 : i32
    %c0_i32_1 = arith.constant 0 : i32
    return %c0_i32, %c0_i32_0 : i32, i32
  }
  func.func @transform_2(%arg0: i32) -> (i32, i32) {
    %c0_i32 = arith.constant 0 : i32
    %c0_i32_0 = arith.constant 0 : i32
    %c0_i32_1 = arith.constant 0 : i32
    return %c0_i32, %c0_i32_0 : i32, i32
  }
  func.func @transform_3(%arg0: i32) -> (i32, i32) {
    %c0_i32 = arith.constant 0 : i32
    %c0_i32_0 = arith.constant 0 : i32
    %c0_i32_1 = arith.constant 0 : i32
    return %c0_i32, %c0_i32_0 : i32, i32
  }
  func.func @transform_4(%arg0: i32) -> (i32, i32) {
    %c0_i32 = arith.constant 0 : i32
    %c0_i32_0 = arith.constant 0 : i32
    %c0_i32_1 = arith.constant 0 : i32
    return %c0_i32, %c0_i32_0 : i32, i32
  }
  func.func @transform_5(%arg0: i32) -> (i32, i32) {
    %c0_i32 = arith.constant 0 : i32
    %c0_i32_0 = arith.constant 0 : i32
    %c0_i32_1 = arith.constant 0 : i32
    return %c0_i32, %c0_i32_0 : i32, i32
  }
  func.func @transform_6(%arg0: i32) -> (i32, i32) {
    %c0_i32 = arith.constant 0 : i32
    %c0_i32_0 = arith.constant 0 : i32
    %c0_i32_1 = arith.constant 0 : i32
    return %c0_i32, %c0_i32_0 : i32, i32
  }
  func.func @transform_7(%arg0: i32) -> (i32, i32) {
    %c0_i32 = arith.constant 0 : i32
    %c0_i32_0 = arith.constant 0 : i32
    %c0_i32_1 = arith.constant 0 : i32
    return %c0_i32, %c0_i32_0 : i32, i32
  }
  func.func @transform_8(%arg0: i32) -> (i32, i32) {
    %c0_i32 = arith.constant 0 : i32
    %c0_i32_0 = arith.constant 0 : i32
    %c0_i32_1 = arith.constant 0 : i32
    return %c0_i32, %c0_i32_0 : i32, i32
  }
  func.func @transform_9(%arg0: i32) -> (i32, i32) {
    %c0_i32 = arith.constant 0 : i32
    %c0_i32_0 = arith.constant 0 : i32
    return %arg0, %c0_i32 : i32, i32
  }
}

</mosaic_0001>

<llo_original>
// kernel: pytorch_ann_forward.1
$region0: #{pytorch_ann_forward.1}
  #allocation0 [shape = 'u32[]', space=smem, size = 0x4, offset = 0x4, fixed_abs, tag = 'smem constant byte address 0x4 - core index']
  #allocation1 [shape = 'u32[144,128]{1,0:T(1,128)}', space=vmem, size = 0x12000, scoped, tag = 'internal scratch']
  %s0 = inlined_call_operand.vmem [shape: f32[16,256], index: 0, kind: input, shape index: {}]
  %s1 = inlined_call_operand.hbm [shape: bf16[256,512], index: 1, kind: input, shape index: {}]
  %s2 = inlined_call_operand.vmem [shape: f32[1,512], index: 2, kind: input, shape index: {}]
  %s3 = inlined_call_operand.hbm [shape: bf16[512,256], index: 3, kind: input, shape index: {}]
  %s4 = inlined_call_operand.vmem [shape: f32[1,256], index: 4, kind: input, shape index: {}]
  %s5 = inlined_call_operand.hbm [shape: bf16[256,128], index: 5, kind: input, shape index: {}]
  %s6 = inlined_call_operand.vmem [shape: f32[1,128], index: 6, kind: input, shape index: {}]
  %s7 = inlined_call_operand.hbm [shape: bf16[128,128], index: 7, kind: input, shape index: {}]
  %s8 = inlined_call_operand.vmem [shape: f32[1,128], index: 8, kind: input, shape index: {}]
  %s9 = inlined_call_operand.vmem [shape: bf16[16,128], index: 9, kind: output, shape index: {}]
  %s10 = sld [smem:[#allocation0]]
  $region62: #{pytorch_ann_forward.1} parent=0
    _
  %s12 = ssub.s32 1, %s10
  %s13 = scalar_select 0, %s12, %s10
  $region1: #{pytorch_ann_forward.1} parent=0
    #allocation2 [shape = 'u8[262144]{0}', space=vmem, size = 0x40000, scoped, tag = 'input window, operand 1, single buffered']
    #allocation3 [shape = 's32[1]{0}', space=sflag, size = 0x4, scoped, tag = 'scoped memory for pytorch_ann_forward.1']
    #allocation4 [shape = 'u8[262144]{0}', space=vmem, size = 0x40000, scoped, tag = 'input window, operand 3, single buffered']
    #allocation5 [shape = 's32[1]{0}', space=sflag, size = 0x4, scoped, tag = 'scoped memory for pytorch_ann_forward.1']
    #allocation6 [shape = 'u8[65536]{0}', space=vmem, size = 0x10000, scoped, tag = 'input window, operand 5, single buffered']
    #allocation7 [shape = 'u8[32768]{0}', space=vmem, size = 0x8000, scoped, tag = 'input window, operand 7, single buffered']
    #allocation8 [shape = 's32[1]{0}', space=sflag, size = 0x4, scoped, tag = 'scoped memory for pytorch_ann_forward.1']
    %14 = vsyncpa [#allocation3], 0
    %15 = vsyncpa [#allocation5], 0
    %16 = vsyncpa [#allocation8], 0
    // Predicated region
    $region2: #{pytorch_ann_forward.1} parent=1 // pred_check
      _
    $region3: #{pytorch_ann_forward.1} parent=1 // pred_check_branch
      %18 = sbr.rel (0) target = $region5
    $region4: #{pytorch_ann_forward.1} parent=1 // pred_region
      _
    $region5: #{pytorch_ann_forward.1} parent=1 // pred_fallthru
      _
    // Predicated region
    $region6: #{pytorch_ann_forward.1} parent=1 // pred_check
      _
    $region7: #{pytorch_ann_forward.1} parent=1 // pred_check_branch
      %20 = sbr.rel (0) target = $region9
    $region8: #{pytorch_ann_forward.1} parent=1 // pred_region
      %s22 = ssub.s32 8192, 8192
      %23 = vsyncadd [#allocation3], %s22
      %s24 = sshll.u32 [#allocation2], 4
      %s25 = int_to_ptr.vmem [resolvable:$true] %s24
      %30 = dma.hbm_to_vmem [thread:$0]  %s1, 8192, %s25, [#allocation3], 256, 256, 16
    $region9: #{pytorch_ann_forward.1} parent=1 // pred_fallthru
      _
    // Predicated region
    $region10: #{pytorch_ann_forward.1} parent=1 // pred_check
      _
    $region11: #{pytorch_ann_forward.1} parent=1 // pred_check_branch
      %32 = sbr.rel (0) target = $region13
    $region12: #{pytorch_ann_forward.1} parent=1 // pred_region
      _
    $region13: #{pytorch_ann_forward.1} parent=1 // pred_fallthru
      _
    // Predicated region
    $region14: #{pytorch_ann_forward.1} parent=1 // pred_check
      _
    $region15: #{pytorch_ann_forward.1} parent=1 // pred_check_branch
      %34 = sbr.rel (0) target = $region17
    $region16: #{pytorch_ann_forward.1} parent=1 // pred_region
      %s36 = ssub.s32 8192, 8192
      %37 = vsyncadd [#allocation5], %s36
      %s38 = sshll.u32 [#allocation4], 4
      %s39 = int_to_ptr.vmem [resolvable:$true] %s38
      %44 = dma.hbm_to_vmem [thread:$0]  %s3, 8192, %s39, [#allocation5], 128, 128, 8
    $region17: #{pytorch_ann_forward.1} parent=1 // pred_fallthru
      _
    // Predicated region
    $region18: #{pytorch_ann_forward.1} parent=1 // pred_check
      _
    $region19: #{pytorch_ann_forward.1} parent=1 // pred_check_branch
      %46 = sbr.rel (0) target = $region21
    $region20: #{pytorch_ann_forward.1} parent=1 // pred_region
      _
    $region21: #{pytorch_ann_forward.1} parent=1 // pred_fallthru
      _
    // Predicated region
    $region22: #{pytorch_ann_forward.1} parent=1 // pred_check
      _
    $region23: #{pytorch_ann_forward.1} parent=1 // pred_check_branch
      %48 = sbr.rel (0) target = $region25
    $region24: #{pytorch_ann_forward.1} parent=1 // pred_region
      %s50 = ssub.s32 2048, 2048
      %51 = vsyncadd [#allocation5], %s50
      %s52 = sshll.u32 [#allocation6], 4
      %s53 = int_to_ptr.vmem [resolvable:$true] %s52
      %58 = dma.hbm_to_vmem [thread:$0]  %s5, 2048, %s53, [#allocation5], 64, 64, 4
    $region25: #{pytorch_ann_forward.1} parent=1 // pred_fallthru
      _
    // Predicated region
    $region26: #{pytorch_ann_forward.1} parent=1 // pred_check
      _
    $region27: #{pytorch_ann_forward.1} parent=1 // pred_check_branch
      %60 = sbr.rel (0) target = $region29
    $region28: #{pytorch_ann_forward.1} parent=1 // pred_region
      _
    $region29: #{pytorch_ann_forward.1} parent=1 // pred_fallthru
      _
    // Predicated region
    $region30: #{pytorch_ann_forward.1} parent=1 // pred_check
      _
    $region31: #{pytorch_ann_forward.1} parent=1 // pred_check_branch
      %62 = sbr.rel (0) target = $region33
    $region32: #{pytorch_ann_forward.1} parent=1 // pred_region
      %s64 = ssub.s32 1024, 1024
      %65 = vsyncadd [#allocation8], %s64
      %s66 = sshll.u32 [#allocation7], 4
      %s67 = int_to_ptr.vmem [resolvable:$true] %s66
      %72 = dma.hbm_to_vmem [thread:$0]  %s7, 1024, %s67, [#allocation8], 64, 64, 4
    $region33: #{pytorch_ann_forward.1} parent=1 // pred_fallthru
      _
    // Predicated region
    $region34: #{pytorch_ann_forward.1} parent=1 // pred_check
      _
    $region35: #{pytorch_ann_forward.1} parent=1 // pred_check_branch
      %74 = sbr.rel (0) target = $region37
    $region36: #{pytorch_ann_forward.1} parent=1 // pred_region
      _
    $region37: #{pytorch_ann_forward.1} parent=1 // pred_fallthru
      _
    // Predicated region
    $region38: #{pytorch_ann_forward.1} parent=1 // pred_check
      _
    $region39: #{pytorch_ann_forward.1} parent=1 // pred_check_branch
      %76 = sbr.rel (0) target = $region41
    $region40: #{pytorch_ann_forward.1} parent=1 // pred_region
      %77 = dma.done [#allocation3], 8192
    $region41: #{pytorch_ann_forward.1} parent=1 // pred_fallthru
      _
    // Predicated region
    $region42: #{pytorch_ann_forward.1} parent=1 // pred_check
      _
    $region43: #{pytorch_ann_forward.1} parent=1 // pred_check_branch
      %79 = sbr.rel (0) target = $region45
    $region44: #{pytorch_ann_forward.1} parent=1 // pred_region
      %80 = dma.done [#allocation5], 8192
    $region45: #{pytorch_ann_forward.1} parent=1 // pred_fallthru
      _
    // Predicated region
    $region46: #{pytorch_ann_forward.1} parent=1 // pred_check
      _
    $region47: #{pytorch_ann_forward.1} parent=1 // pred_check_branch
      %82 = sbr.rel (0) target = $region49
    $region48: #{pytorch_ann_forward.1} parent=1 // pred_region
      %83 = dma.done [#allocation5], 2048
    $region49: #{pytorch_ann_forward.1} parent=1 // pred_fallthru
      _
    // Predicated region
    $region50: #{pytorch_ann_forward.1} parent=1 // pred_check
      _
    $region51: #{pytorch_ann_forward.1} parent=1 // pred_check_branch
      %85 = sbr.rel (0) target = $region53
    $region52: #{pytorch_ann_forward.1} parent=1 // pred_region
      %86 = dma.done [#allocation8], 1024
    $region53: #{pytorch_ann_forward.1} parent=1 // pred_fallthru
      _
    %v88 = vld [vmem:[%s0] sm:$0xff]
    %v89 = vld [vmem:[%s0 + $0x8] sm:$0xff]
    %v90 = vld [vmem:[%s0 + $0x10] sm:$0xff]
    %v91 = vld [vmem:[%s0 + $0x18] sm:$0xff]
    %v92 = vpack.c.bf16 %v90, %v88
    %v93 = vpack.c.bf16 %v91, %v89
    %v94 = vld [vmem:[#allocation2] sm:$0xff]
    %v95 = vld [vmem:[#allocation2 + $0x8] sm:$0xff]
    %v96 = vld [vmem:[#allocation2 + $0x10] sm:$0xff]
    %v97 = vld [vmem:[#allocation2 + $0x18] sm:$0xff]
    %v98 = vld [vmem:[#allocation2 + $0x20] sm:$0xff]
    %v99 = vld [vmem:[#allocation2 + $0x28] sm:$0xff]
    %v100 = vld [vmem:[#allocation2 + $0x30] sm:$0xff]
    %v101 = vld [vmem:[#allocation2 + $0x38] sm:$0xff]
    %v102 = vld [vmem:[#allocation2 + $0x40] sm:$0xff]
    %v103 = vld [vmem:[#allocation2 + $0x48] sm:$0xff]
    %v104 = vld [vmem:[#allocation2 + $0x50] sm:$0xff]
    %v105 = vld [vmem:[#allocation2 + $0x58] sm:$0xff]
    %v106 = vld [vmem:[#allocation2 + $0x60] sm:$0xff]
    %v107 = vld [vmem:[#allocation2 + $0x68] sm:$0xff]
    %v108 = vld [vmem:[#allocation2 + $0x70] sm:$0xff]
    %v109 = vld [vmem:[#allocation2 + $0x78] sm:$0xff]
    %v110 = vld [vmem:[#allocation2 + $0x80] sm:$0xff]
    %v111 = vld [vmem:[#allocation2 + $0x88] sm:$0xff]
    %v112 = vld [vmem:[#allocation2 + $0x90] sm:$0xff]
    %v113 = vld [vmem:[#allocation2 + $0x98] sm:$0xff]
    %v114 = vld [vmem:[#allocation2 + $0xa0] sm:$0xff]
    %v115 = vld [vmem:[#allocation2 + $0xa8] sm:$0xff]
    %v116 = vld [vmem:[#allocation2 + $0xb0] sm:$0xff]
    %v117 = vld [vmem:[#allocation2 + $0xb8] sm:$0xff]
    %v118 = vld [vmem:[#allocation2 + $0xc0] sm:$0xff]
    %v119 = vld [vmem:[#allocation2 + $0xc8] sm:$0xff]
    %v120 = vld [vmem:[#allocation2 + $0xd0] sm:$0xff]
    %v121 = vld [vmem:[#allocation2 + $0xd8] sm:$0xff]
    %v122 = vld [vmem:[#allocation2 + $0xe0] sm:$0xff]
    %v123 = vld [vmem:[#allocation2 + $0xe8] sm:$0xff]
    %v124 = vld [vmem:[#allocation2 + $0xf0] sm:$0xff]
    %v125 = vld [vmem:[#allocation2 + $0xf8] sm:$0xff]
    %v126 = vld [vmem:[#allocation2 + $0x100] sm:$0xff]
    %v127 = vld [vmem:[#allocation2 + $0x108] sm:$0xff]
    %v128 = vld [vmem:[#allocation2 + $0x110] sm:$0xff]
    %v129 = vld [vmem:[#allocation2 + $0x118] sm:$0xff]
    %v130 = vld [vmem:[#allocation2 + $0x120] sm:$0xff]
    %v131 = vld [vmem:[#allocation2 + $0x128] sm:$0xff]
    %v132 = vld [vmem:[#allocation2 + $0x130] sm:$0xff]
    %v133 = vld [vmem:[#allocation2 + $0x138] sm:$0xff]
    %v134 = vld [vmem:[#allocation2 + $0x140] sm:$0xff]
    %v135 = vld [vmem:[#allocation2 + $0x148] sm:$0xff]
    %v136 = vld [vmem:[#allocation2 + $0x150] sm:$0xff]
    %v137 = vld [vmem:[#allocation2 + $0x158] sm:$0xff]
    %v138 = vld [vmem:[#allocation2 + $0x160] sm:$0xff]
    %v139 = vld [vmem:[#allocation2 + $0x168] sm:$0xff]
    %v140 = vld [vmem:[#allocation2 + $0x170] sm:$0xff]
    %v141 = vld [vmem:[#allocation2 + $0x178] sm:$0xff]
    %v142 = vld [vmem:[#allocation2 + $0x180] sm:$0xff]
    %v143 = vld [vmem:[#allocation2 + $0x188] sm:$0xff]
    %v144 = vld [vmem:[#allocation2 + $0x190] sm:$0xff]
    %v145 = vld [vmem:[#allocation2 + $0x198] sm:$0xff]
    %v146 = vld [vmem:[#allocation2 + $0x1a0] sm:$0xff]
    %v147 = vld [vmem:[#allocation2 + $0x1a8] sm:$0xff]
    %v148 = vld [vmem:[#allocation2 + $0x1b0] sm:$0xff]
    %v149 = vld [vmem:[#allocation2 + $0x1b8] sm:$0xff]
    %v150 = vld [vmem:[#allocation2 + $0x1c0] sm:$0xff]
    %v151 = vld [vmem:[#allocation2 + $0x1c8] sm:$0xff]
    %v152 = vld [vmem:[#allocation2 + $0x1d0] sm:$0xff]
    %v153 = vld [vmem:[#allocation2 + $0x1d8] sm:$0xff]
    %v154 = vld [vmem:[#allocation2 + $0x1e0] sm:$0xff]
    %v155 = vld [vmem:[#allocation2 + $0x1e8] sm:$0xff]
    %v156 = vld [vmem:[#allocation2 + $0x1f0] sm:$0xff]
    %v157 = vld [vmem:[#allocation2 + $0x1f8] sm:$0xff]
    %v158 = vld [vmem:[%s2] sm:$0xf]
    %v160 = vlaneseq
    %v161 = vshrl.u32 %v160, 7
    %v162 = vsub.s32 0, %v161
    %v163 = vrot.slane %v158, %v162
    %v164 = vlaneseq
    %v165 = vshrl.u32 %v164, 7
    %v166 = vsub.s32 1, %v165
    %v167 = vrot.slane %v158, %v166
    %v168 = vlaneseq
    %v169 = vshrl.u32 %v168, 7
    %v170 = vsub.s32 2, %v169
    %v171 = vrot.slane %v158, %v170
    %v172 = vlaneseq
    %v173 = vshrl.u32 %v172, 7
    %v174 = vsub.s32 3, %v173
    %v175 = vrot.slane %v158, %v174
    %v244 = vunpack.c.l.b16 %v94
    %v245 = vunpack.c.h.b16 %v94
    %v246 = vunpack.c.l.b16 %v95
    %v247 = vunpack.c.h.b16 %v95
    %v248 = vunpack.c.l.b16 %v96
    %v249 = vunpack.c.h.b16 %v96
    %v250 = vunpack.c.l.b16 %v97
    %v251 = vunpack.c.h.b16 %v97
    %v252 = vunpack.c.l.b16 %v98
    %v253 = vunpack.c.h.b16 %v98
    %v254 = vunpack.c.l.b16 %v99
    %v255 = vunpack.c.h.b16 %v99
    %v256 = vunpack.c.l.b16 %v100
    %v257 = vunpack.c.h.b16 %v100
    %v258 = vunpack.c.l.b16 %v101
    %v259 = vunpack.c.h.b16 %v101
    %v260 = vunpack.c.l.b16 %v102
    %v261 = vunpack.c.h.b16 %v102
    %v262 = vunpack.c.l.b16 %v103
    %v263 = vunpack.c.h.b16 %v103
    %v264 = vunpack.c.l.b16 %v104
    %v265 = vunpack.c.h.b16 %v104
    %v266 = vunpack.c.l.b16 %v105
    %v267 = vunpack.c.h.b16 %v105
    %v268 = vunpack.c.l.b16 %v106
    %v269 = vunpack.c.h.b16 %v106
    %v270 = vunpack.c.l.b16 %v107
    %v271 = vunpack.c.h.b16 %v107
    %v272 = vunpack.c.l.b16 %v108
    %v273 = vunpack.c.h.b16 %v108
    %v274 = vunpack.c.l.b16 %v109
    %v275 = vunpack.c.h.b16 %v109
    %v276 = vunpack.c.l.b16 %v110
    %v277 = vunpack.c.h.b16 %v110
    %v278 = vunpack.c.l.b16 %v111
    %v279 = vunpack.c.h.b16 %v111
    %v280 = vunpack.c.l.b16 %v112
    %v281 = vunpack.c.h.b16 %v112
    %v282 = vunpack.c.l.b16 %v113
    %v283 = vunpack.c.h.b16 %v113
    %v284 = vunpack.c.l.b16 %v114
    %v285 = vunpack.c.h.b16 %v114
    %v286 = vunpack.c.l.b16 %v115
    %v287 = vunpack.c.h.b16 %v115
    %v288 = vunpack.c.l.b16 %v116
    %v289 = vunpack.c.h.b16 %v116
    %v290 = vunpack.c.l.b16 %v117
    %v291 = vunpack.c.h.b16 %v117
    %v292 = vunpack.c.l.b16 %v118
    %v293 = vunpack.c.h.b16 %v118
    %v294 = vunpack.c.l.b16 %v119
    %v295 = vunpack.c.h.b16 %v119
    %v296 = vunpack.c.l.b16 %v120
    %v297 = vunpack.c.h.b16 %v120
    %v298 = vunpack.c.l.b16 %v121
    %v299 = vunpack.c.h.b16 %v121
    %v300 = vunpack.c.l.b16 %v122
    %v301 = vunpack.c.h.b16 %v122
    %v302 = vunpack.c.l.b16 %v123
    %v303 = vunpack.c.h.b16 %v123
    %v304 = vunpack.c.l.b16 %v124
    %v305 = vunpack.c.h.b16 %v124
    %v306 = vunpack.c.l.b16 %v125
    %v307 = vunpack.c.h.b16 %v125
    %v308 = vunpack.c.l.b16 %v126
    %v309 = vunpack.c.h.b16 %v126
    %v310 = vunpack.c.l.b16 %v127
    %v311 = vunpack.c.h.b16 %v127
    %v312 = vunpack.c.l.b16 %v128
    %v313 = vunpack.c.h.b16 %v128
    %v314 = vunpack.c.l.b16 %v129
    %v315 = vunpack.c.h.b16 %v129
    %v316 = vunpack.c.l.b16 %v130
    %v317 = vunpack.c.h.b16 %v130
    %v318 = vunpack.c.l.b16 %v131
    %v319 = vunpack.c.h.b16 %v131
    %v320 = vunpack.c.l.b16 %v132
    %v321 = vunpack.c.h.b16 %v132
    %v322 = vunpack.c.l.b16 %v133
    %v323 = vunpack.c.h.b16 %v133
    %v324 = vunpack.c.l.b16 %v134
    %v325 = vunpack.c.h.b16 %v134
    %v326 = vunpack.c.l.b16 %v135
    %v327 = vunpack.c.h.b16 %v135
    %v328 = vunpack.c.l.b16 %v136
    %v329 = vunpack.c.h.b16 %v136
    %v330 = vunpack.c.l.b16 %v137
    %v331 = vunpack.c.h.b16 %v137
    %v332 = vunpack.c.l.b16 %v138
    %v333 = vunpack.c.h.b16 %v138
    %v334 = vunpack.c.l.b16 %v139
    %v335 = vunpack.c.h.b16 %v139
    %v336 = vunpack.c.l.b16 %v140
    %v337 = vunpack.c.h.b16 %v140
    %v338 = vunpack.c.l.b16 %v141
    %v339 = vunpack.c.h.b16 %v141
    %v340 = vunpack.c.l.b16 %v142
    %v341 = vunpack.c.h.b16 %v142
    %v342 = vunpack.c.l.b16 %v143
    %v343 = vunpack.c.h.b16 %v143
    %v344 = vunpack.c.l.b16 %v144
    %v345 = vunpack.c.h.b16 %v144
    %v346 = vunpack.c.l.b16 %v145
    %v347 = vunpack.c.h.b16 %v145
    %v348 = vunpack.c.l.b16 %v146
    %v349 = vunpack.c.h.b16 %v146
    %v350 = vunpack.c.l.b16 %v147
    %v351 = vunpack.c.h.b16 %v147
    %v352 = vunpack.c.l.b16 %v148
    %v353 = vunpack.c.h.b16 %v148
    %v354 = vunpack.c.l.b16 %v149
    %v355 = vunpack.c.h.b16 %v149
    %v356 = vunpack.c.l.b16 %v150
    %v357 = vunpack.c.h.b16 %v150
    %v358 = vunpack.c.l.b16 %v151
    %v359 = vunpack.c.h.b16 %v151
    %v360 = vunpack.c.l.b16 %v152
    %v361 = vunpack.c.h.b16 %v152
    %v362 = vunpack.c.l.b16 %v153
    %v363 = vunpack.c.h.b16 %v153
    %v364 = vunpack.c.l.b16 %v154
    %v365 = vunpack.c.h.b16 %v154
    %v366 = vunpack.c.l.b16 %v155
    %v367 = vunpack.c.h.b16 %v155
    %v368 = vunpack.c.l.b16 %v156
    %v369 = vunpack.c.h.b16 %v156
    %v370 = vunpack.c.l.b16 %v157
    %v371 = vunpack.c.h.b16 %v157
    %v372 = vpack.c.b16 %v248, %v244
    %v373 = vpack.c.b16 %v249, %v245
    %v374 = vpack.c.b16 %v250, %v246
    %v375 = vpack.c.b16 %v251, %v247
    %v376 = vpack.c.b16 %v256, %v252
    %v377 = vpack.c.b16 %v257, %v253
    %v378 = vpack.c.b16 %v258, %v254
    %v379 = vpack.c.b16 %v259, %v255
    %v380 = vpack.c.b16 %v264, %v260
    %v381 = vpack.c.b16 %v265, %v261
    %v382 = vpack.c.b16 %v266, %v262
    %v383 = vpack.c.b16 %v267, %v263
    %v384 = vpack.c.b16 %v272, %v268
    %v385 = vpack.c.b16 %v273, %v269
    %v386 = vpack.c.b16 %v274, %v270
    %v387 = vpack.c.b16 %v275, %v271
    %v388 = vpack.c.b16 %v280, %v276
    %v389 = vpack.c.b16 %v281, %v277
    %v390 = vpack.c.b16 %v282, %v278
    %v391 = vpack.c.b16 %v283, %v279
    %v392 = vpack.c.b16 %v288, %v284
    %v393 = vpack.c.b16 %v289, %v285
    %v394 = vpack.c.b16 %v290, %v286
    %v395 = vpack.c.b16 %v291, %v287
    %v396 = vpack.c.b16 %v296, %v292
    %v397 = vpack.c.b16 %v297, %v293
    %v398 = vpack.c.b16 %v298, %v294
    %v399 = vpack.c.b16 %v299, %v295
    %v400 = vpack.c.b16 %v304, %v300
    %v401 = vpack.c.b16 %v305, %v301
    %v402 = vpack.c.b16 %v306, %v302
    %v403 = vpack.c.b16 %v307, %v303
    %v404 = vpack.c.b16 %v312, %v308
    %v405 = vpack.c.b16 %v313, %v309
    %v406 = vpack.c.b16 %v314, %v310
    %v407 = vpack.c.b16 %v315, %v311
    %v408 = vpack.c.b16 %v320, %v316
    %v409 = vpack.c.b16 %v321, %v317
    %v410 = vpack.c.b16 %v322, %v318
    %v411 = vpack.c.b16 %v323, %v319
    %v412 = vpack.c.b16 %v328, %v324
    %v413 = vpack.c.b16 %v329, %v325
    %v414 = vpack.c.b16 %v330, %v326
    %v415 = vpack.c.b16 %v331, %v327
    %v416 = vpack.c.b16 %v336, %v332
    %v417 = vpack.c.b16 %v337, %v333
    %v418 = vpack.c.b16 %v338, %v334
    %v419 = vpack.c.b16 %v339, %v335
    %v420 = vpack.c.b16 %v344, %v340
    %v421 = vpack.c.b16 %v345, %v341
    %v422 = vpack.c.b16 %v346, %v342
    %v423 = vpack.c.b16 %v347, %v343
    %v424 = vpack.c.b16 %v352, %v348
    %v425 = vpack.c.b16 %v353, %v349
    %v426 = vpack.c.b16 %v354, %v350
    %v427 = vpack.c.b16 %v355, %v351
    %v428 = vpack.c.b16 %v360, %v356
    %v429 = vpack.c.b16 %v361, %v357
    %v430 = vpack.c.b16 %v362, %v358
    %v431 = vpack.c.b16 %v363, %v359
    %v432 = vpack.c.b16 %v368, %v364
    %v433 = vpack.c.b16 %v369, %v365
    %v434 = vpack.c.b16 %v370, %v366
    %v435 = vpack.c.b16 %v371, %v367
    %500 = vmatprep.subr.bf16.mxu0 %v401
    %501 = vmatpush1.bf16.msra.mxu0 %v400
    %502 = vmatprep.subr.bf16.mxu0 %v397
    %503 = vmatpush1.bf16.msra.mxu0 %v396
    %504 = vmatprep.subr.bf16.mxu0 %v393
    %505 = vmatpush1.bf16.msra.mxu0 %v392
    %506 = vmatprep.subr.bf16.mxu0 %v389
    %507 = vmatpush1.bf16.msra.mxu0 %v388
    %508 = vmatprep.subr.bf16.mxu0 %v385
    %509 = vmatpush1.bf16.msra.mxu0 %v384
    %510 = vmatprep.subr.bf16.mxu0 %v381
    %511 = vmatpush1.bf16.msra.mxu0 %v380
    %512 = vmatprep.subr.bf16.mxu0 %v377
    %513 = vmatpush1.bf16.msra.mxu0 %v376
    %514 = vmatprep.subr.bf16.mxu0 %v373
    %515 = vmatpush1.bf16.msra.mxu0 %v372
    %516 = vmatprep.subr.bf16.mxu0 %v433
    %517 = vmatpush2.bf16.msra.mxu0 %v432
    %518 = vmatprep.subr.bf16.mxu0 %v429
    %519 = vmatpush2.bf16.msra.mxu0 %v428
    %520 = vmatprep.subr.bf16.mxu0 %v425
    %521 = vmatpush2.bf16.msra.mxu0 %v424
    %522 = vmatprep.subr.bf16.mxu0 %v421
    %523 = vmatpush2.bf16.msra.mxu0 %v420
    %524 = vmatprep.subr.bf16.mxu0 %v417
    %525 = vmatpush2.bf16.msra.mxu0 %v416
    %526 = vmatprep.subr.bf16.mxu0 %v413
    %527 = vmatpush2.bf16.msra.mxu0 %v412
    %528 = vmatprep.subr.bf16.mxu0 %v409
    %529 = vmatpush2.bf16.msra.mxu0 %v408
    %530 = vmatprep.subr.bf16.mxu0 %v405
    %531 = vmatpush2.bf16.msra.mxu0 %v404
    %532 = vmatprep.mubr.bf16.mxu0 %v93
    %533 = vmatmul.mubr.bf16.gmra.mxu0 %v92
    %v534 = vpop.f32.mrf.mxu0
    %v535 = vadd.f32 %v163, %v534
    %v536 = vpop.f32.mrf.mxu0
    %v537 = vadd.f32 %v167, %v536
    %v538 = vpop.f32.mrf.mxu0
    %v539 = vadd.f32 %v163, %v538
    %v540 = vpop.f32.mrf.mxu0
    %v541 = vadd.f32 %v167, %v540
    %542 = vdwg.mxu0
    %543 = vmatprep.subr.bf16.mxu0 %v403
    %544 = vmatpush1.bf16.msra.mxu0 %v402
    %545 = vmatprep.subr.bf16.mxu0 %v399
    %546 = vmatpush1.bf16.msra.mxu0 %v398
    %547 = vmatprep.subr.bf16.mxu0 %v395
    %548 = vmatpush1.bf16.msra.mxu0 %v394
    %549 = vmatprep.subr.bf16.mxu0 %v391
    %550 = vmatpush1.bf16.msra.mxu0 %v390
    %551 = vmatprep.subr.bf16.mxu0 %v387
    %552 = vmatpush1.bf16.msra.mxu0 %v386
    %553 = vmatprep.subr.bf16.mxu0 %v383
    %554 = vmatpush1.bf16.msra.mxu0 %v382
    %555 = vmatprep.subr.bf16.mxu0 %v379
    %556 = vmatpush1.bf16.msra.mxu0 %v378
    %557 = vmatprep.subr.bf16.mxu0 %v375
    %558 = vmatpush1.bf16.msra.mxu0 %v374
    %559 = vmatprep.subr.bf16.mxu0 %v435
    %560 = vmatpush2.bf16.msra.mxu0 %v434
    %561 = vmatprep.subr.bf16.mxu0 %v431
    %562 = vmatpush2.bf16.msra.mxu0 %v430
    %563 = vmatprep.subr.bf16.mxu0 %v427
    %564 = vmatpush2.bf16.msra.mxu0 %v426
    %565 = vmatprep.subr.bf16.mxu0 %v423
    %566 = vmatpush2.bf16.msra.mxu0 %v422
    %567 = vmatprep.subr.bf16.mxu0 %v419
    %568 = vmatpush2.bf16.msra.mxu0 %v418
    %569 = vmatprep.subr.bf16.mxu0 %v415
    %570 = vmatpush2.bf16.msra.mxu0 %v414
    %571 = vmatprep.subr.bf16.mxu0 %v411
    %572 = vmatpush2.bf16.msra.mxu0 %v410
    %573 = vmatprep.subr.bf16.mxu0 %v407
    %574 = vmatpush2.bf16.msra.mxu0 %v406
    %575 = vmatprep.mubr.bf16.mxu0 %v93
    %576 = vmatmul.mubr.bf16.gmra.mxu0 %v92
    %v577 = vpop.f32.mrf.mxu0
    %v578 = vadd.f32 %v171, %v577
    %v579 = vpop.f32.mrf.mxu0
    %v580 = vadd.f32 %v175, %v579
    %v581 = vpop.f32.mrf.mxu0
    %v582 = vadd.f32 %v171, %v581
    %v583 = vpop.f32.mrf.mxu0
    %v584 = vadd.f32 %v175, %v583
    %585 = vdwg.mxu0
    %v586 = vmax.f32 %v535, 0.0
    %v587 = vmax.f32 %v537, 0.0
    %v588 = vmax.f32 %v578, 0.0
    %v589 = vmax.f32 %v580, 0.0
    %v590 = vmax.f32 %v539, 0.0
    %v591 = vmax.f32 %v541, 0.0
    %v592 = vmax.f32 %v582, 0.0
    %v593 = vmax.f32 %v584, 0.0
    %v594 = vpack.c.bf16 %v590, %v586
    %v595 = vpack.c.bf16 %v591, %v587
    %v596 = vpack.c.bf16 %v592, %v588
    %v597 = vpack.c.bf16 %v593, %v589
    %v598 = vld [vmem:[#allocation4] sm:$0xff]
    %v599 = vld [vmem:[#allocation4 + $0x8] sm:$0xff]
    %v600 = vld [vmem:[#allocation4 + $0x10] sm:$0xff]
    %v601 = vld [vmem:[#allocation4 + $0x18] sm:$0xff]
    %v602 = vld [vmem:[#allocation4 + $0x20] sm:$0xff]
    %v603 = vld [vmem:[#allocation4 + $0x28] sm:$0xff]
    %v604 = vld [vmem:[#allocation4 + $0x30] sm:$0xff]
    %v605 = vld [vmem:[#allocation4 + $0x38] sm:$0xff]
    %v606 = vld [vmem:[#allocation4 + $0x40] sm:$0xff]
    %v607 = vld [vmem:[#allocation4 + $0x48] sm:$0xff]
    %v608 = vld [vmem:[#allocation4 + $0x50] sm:$0xff]
    %v609 = vld [vmem:[#allocation4 + $0x58] sm:$0xff]
    %v610 = vld [vmem:[#allocation4 + $0x60] sm:$0xff]
    %v611 = vld [vmem:[#allocation4 + $0x68] sm:$0xff]
    %v612 = vld [vmem:[#allocation4 + $0x70] sm:$0xff]
    %v613 = vld [vmem:[#allocation4 + $0x78] sm:$0xff]
    %v614 = vld [vmem:[#allocation4 + $0x80] sm:$0xff]
    %v615 = vld [vmem:[#allocation4 + $0x88] sm:$0xff]
    %v616 = vld [vmem:[#allocation4 + $0x90] sm:$0xff]
    %v617 = vld [vmem:[#allocation4 + $0x98] sm:$0xff]
    %v618 = vld [vmem:[#allocation4 + $0xa0] sm:$0xff]
    %v619 = vld [vmem:[#allocation4 + $0xa8] sm:$0xff]
    %v620 = vld [vmem:[#allocation4 + $0xb0] sm:$0xff]
    %v621 = vld [vmem:[#allocation4 + $0xb8] sm:$0xff]
    %v622 = vld [vmem:[#allocation4 + $0xc0] sm:$0xff]
    %v623 = vld [vmem:[#allocation4 + $0xc8] sm:$0xff]
    %v624 = vld [vmem:[#allocation4 + $0xd0] sm:$0xff]
    %v625 = vld [vmem:[#allocation4 + $0xd8] sm:$0xff]
    %v626 = vld [vmem:[#allocation4 + $0xe0] sm:$0xff]
    %v627 = vld [vmem:[#allocation4 + $0xe8] sm:$0xff]
    %v628 = vld [vmem:[#allocation4 + $0xf0] sm:$0xff]
    %v629 = vld [vmem:[#allocation4 + $0xf8] sm:$0xff]
    %v630 = vld [vmem:[#allocation4 + $0x100] sm:$0xff]
    %v631 = vld [vmem:[#allocation4 + $0x108] sm:$0xff]
    %v632 = vld [vmem:[#allocation4 + $0x110] sm:$0xff]
    %v633 = vld [vmem:[#allocation4 + $0x118] sm:$0xff]
    %v634 = vld [vmem:[#allocation4 + $0x120] sm:$0xff]
    %v635 = vld [vmem:[#allocation4 + $0x128] sm:$0xff]
    %v636 = vld [vmem:[#allocation4 + $0x130] sm:$0xff]
    %v637 = vld [vmem:[#allocation4 + $0x138] sm:$0xff]
    %v638 = vld [vmem:[#allocation4 + $0x140] sm:$0xff]
    %v639 = vld [vmem:[#allocation4 + $0x148] sm:$0xff]
    %v640 = vld [vmem:[#allocation4 + $0x150] sm:$0xff]
    %v641 = vld [vmem:[#allocation4 + $0x158] sm:$0xff]
    %v642 = vld [vmem:[#allocation4 + $0x160] sm:$0xff]
    %v643 = vld [vmem:[#allocation4 + $0x168] sm:$0xff]
    %v644 = vld [vmem:[#allocation4 + $0x170] sm:$0xff]
    %v645 = vld [vmem:[#allocation4 + $0x178] sm:$0xff]
    %v646 = vld [vmem:[#allocation4 + $0x180] sm:$0xff]
    %v647 = vld [vmem:[#allocation4 + $0x188] sm:$0xff]
    %v648 = vld [vmem:[#allocation4 + $0x190] sm:$0xff]
    %v649 = vld [vmem:[#allocation4 + $0x198] sm:$0xff]
    %v650 = vld [vmem:[#allocation4 + $0x1a0] sm:$0xff]
    %v651 = vld [vmem:[#allocation4 + $0x1a8] sm:$0xff]
    %v652 = vld [vmem:[#allocation4 + $0x1b0] sm:$0xff]
    %v653 = vld [vmem:[#allocation4 + $0x1b8] sm:$0xff]
    %v654 = vld [vmem:[#allocation4 + $0x1c0] sm:$0xff]
    %v655 = vld [vmem:[#allocation4 + $0x1c8] sm:$0xff]
    %v656 = vld [vmem:[#allocation4 + $0x1d0] sm:$0xff]
    %v657 = vld [vmem:[#allocation4 + $0x1d8] sm:$0xff]
    %v658 = vld [vmem:[#allocation4 + $0x1e0] sm:$0xff]
    %v659 = vld [vmem:[#allocation4 + $0x1e8] sm:$0xff]
    %v660 = vld [vmem:[#allocation4 + $0x1f0] sm:$0xff]
    %v661 = vld [vmem:[#allocation4 + $0x1f8] sm:$0xff]
    %v662 = vld [vmem:[%s4] sm:$0x3]
    %v664 = vlaneseq
    %v665 = vshrl.u32 %v664, 7
    %v666 = vsub.s32 0, %v665
    %v667 = vrot.slane %v662, %v666
    %v668 = vlaneseq
    %v669 = vshrl.u32 %v668, 7
    %v670 = vsub.s32 1, %v669
    %v671 = vrot.slane %v662, %v670
    %v738 = vunpack.c.l.b16 %v598
    %v739 = vunpack.c.h.b16 %v598
    %v740 = vunpack.c.l.b16 %v599
    %v741 = vunpack.c.h.b16 %v599
    %v742 = vunpack.c.l.b16 %v600
    %v743 = vunpack.c.h.b16 %v600
    %v744 = vunpack.c.l.b16 %v601
    %v745 = vunpack.c.h.b16 %v601
    %v746 = vunpack.c.l.b16 %v602
    %v747 = vunpack.c.h.b16 %v602
    %v748 = vunpack.c.l.b16 %v603
    %v749 = vunpack.c.h.b16 %v603
    %v750 = vunpack.c.l.b16 %v604
    %v751 = vunpack.c.h.b16 %v604
    %v752 = vunpack.c.l.b16 %v605
    %v753 = vunpack.c.h.b16 %v605
    %v754 = vunpack.c.l.b16 %v606
    %v755 = vunpack.c.h.b16 %v606
    %v756 = vunpack.c.l.b16 %v607
    %v757 = vunpack.c.h.b16 %v607
    %v758 = vunpack.c.l.b16 %v608
    %v759 = vunpack.c.h.b16 %v608
    %v760 = vunpack.c.l.b16 %v609
    %v761 = vunpack.c.h.b16 %v609
    %v762 = vunpack.c.l.b16 %v610
    %v763 = vunpack.c.h.b16 %v610
    %v764 = vunpack.c.l.b16 %v611
    %v765 = vunpack.c.h.b16 %v611
    %v766 = vunpack.c.l.b16 %v612
    %v767 = vunpack.c.h.b16 %v612
    %v768 = vunpack.c.l.b16 %v613
    %v769 = vunpack.c.h.b16 %v613
    %v770 = vunpack.c.l.b16 %v614
    %v771 = vunpack.c.h.b16 %v614
    %v772 = vunpack.c.l.b16 %v615
    %v773 = vunpack.c.h.b16 %v615
    %v774 = vunpack.c.l.b16 %v616
    %v775 = vunpack.c.h.b16 %v616
    %v776 = vunpack.c.l.b16 %v617
    %v777 = vunpack.c.h.b16 %v617
    %v778 = vunpack.c.l.b16 %v618
    %v779 = vunpack.c.h.b16 %v618
    %v780 = vunpack.c.l.b16 %v619
    %v781 = vunpack.c.h.b16 %v619
    %v782 = vunpack.c.l.b16 %v620
    %v783 = vunpack.c.h.b16 %v620
    %v784 = vunpack.c.l.b16 %v621
    %v785 = vunpack.c.h.b16 %v621
    %v786 = vunpack.c.l.b16 %v622
    %v787 = vunpack.c.h.b16 %v622
    %v788 = vunpack.c.l.b16 %v623
    %v789 = vunpack.c.h.b16 %v623
    %v790 = vunpack.c.l.b16 %v624
    %v791 = vunpack.c.h.b16 %v624
    %v792 = vunpack.c.l.b16 %v625
    %v793 = vunpack.c.h.b16 %v625
    %v794 = vunpack.c.l.b16 %v626
    %v795 = vunpack.c.h.b16 %v626
    %v796 = vunpack.c.l.b16 %v627
    %v797 = vunpack.c.h.b16 %v627
    %v798 = vunpack.c.l.b16 %v628
    %v799 = vunpack.c.h.b16 %v628
    %v800 = vunpack.c.l.b16 %v629
    %v801 = vunpack.c.h.b16 %v629
    %v802 = vunpack.c.l.b16 %v630
    %v803 = vunpack.c.h.b16 %v630
    %v804 = vunpack.c.l.b16 %v631
    %v805 = vunpack.c.h.b16 %v631
    %v806 = vunpack.c.l.b16 %v632
    %v807 = vunpack.c.h.b16 %v632
    %v808 = vunpack.c.l.b16 %v633
    %v809 = vunpack.c.h.b16 %v633
    %v810 = vunpack.c.l.b16 %v634
    %v811 = vunpack.c.h.b16 %v634
    %v812 = vunpack.c.l.b16 %v635
    %v813 = vunpack.c.h.b16 %v635
    %v814 = vunpack.c.l.b16 %v636
    %v815 = vunpack.c.h.b16 %v636
    %v816 = vunpack.c.l.b16 %v637
    %v817 = vunpack.c.h.b16 %v637
    %v818 = vunpack.c.l.b16 %v638
    %v819 = vunpack.c.h.b16 %v638
    %v820 = vunpack.c.l.b16 %v639
    %v821 = vunpack.c.h.b16 %v639
    %v822 = vunpack.c.l.b16 %v640
    %v823 = vunpack.c.h.b16 %v640
    %v824 = vunpack.c.l.b16 %v641
    %v825 = vunpack.c.h.b16 %v641
    %v826 = vunpack.c.l.b16 %v642
    %v827 = vunpack.c.h.b16 %v642
    %v828 = vunpack.c.l.b16 %v643
    %v829 = vunpack.c.h.b16 %v643
    %v830 = vunpack.c.l.b16 %v644
    %v831 = vunpack.c.h.b16 %v644
    %v832 = vunpack.c.l.b16 %v645
    %v833 = vunpack.c.h.b16 %v645
    %v834 = vunpack.c.l.b16 %v646
    %v835 = vunpack.c.h.b16 %v646
    %v836 = vunpack.c.l.b16 %v647
    %v837 = vunpack.c.h.b16 %v647
    %v838 = vunpack.c.l.b16 %v648
    %v839 = vunpack.c.h.b16 %v648
    %v840 = vunpack.c.l.b16 %v649
    %v841 = vunpack.c.h.b16 %v649
    %v842 = vunpack.c.l.b16 %v650
    %v843 = vunpack.c.h.b16 %v650
    %v844 = vunpack.c.l.b16 %v651
    %v845 = vunpack.c.h.b16 %v651
    %v846 = vunpack.c.l.b16 %v652
    %v847 = vunpack.c.h.b16 %v652
    %v848 = vunpack.c.l.b16 %v653
    %v849 = vunpack.c.h.b16 %v653
    %v850 = vunpack.c.l.b16 %v654
    %v851 = vunpack.c.h.b16 %v654
    %v852 = vunpack.c.l.b16 %v655
    %v853 = vunpack.c.h.b16 %v655
    %v854 = vunpack.c.l.b16 %v656
    %v855 = vunpack.c.h.b16 %v656
    %v856 = vunpack.c.l.b16 %v657
    %v857 = vunpack.c.h.b16 %v657
    %v858 = vunpack.c.l.b16 %v658
    %v859 = vunpack.c.h.b16 %v658
    %v860 = vunpack.c.l.b16 %v659
    %v861 = vunpack.c.h.b16 %v659
    %v862 = vunpack.c.l.b16 %v660
    %v863 = vunpack.c.h.b16 %v660
    %v864 = vunpack.c.l.b16 %v661
    %v865 = vunpack.c.h.b16 %v661
    %v866 = vpack.c.b16 %v740, %v738
    %v867 = vpack.c.b16 %v741, %v739
    %v868 = vpack.c.b16 %v744, %v742
    %v869 = vpack.c.b16 %v745, %v743
    %v870 = vpack.c.b16 %v748, %v746
    %v871 = vpack.c.b16 %v749, %v747
    %v872 = vpack.c.b16 %v752, %v750
    %v873 = vpack.c.b16 %v753, %v751
    %v874 = vpack.c.b16 %v756, %v754
    %v875 = vpack.c.b16 %v757, %v755
    %v876 = vpack.c.b16 %v760, %v758
    %v877 = vpack.c.b16 %v761, %v759
    %v878 = vpack.c.b16 %v764, %v762
    %v879 = vpack.c.b16 %v765, %v763
    %v880 = vpack.c.b16 %v768, %v766
    %v881 = vpack.c.b16 %v769, %v767
    %v882 = vpack.c.b16 %v772, %v770
    %v883 = vpack.c.b16 %v773, %v771
    %v884 = vpack.c.b16 %v776, %v774
    %v885 = vpack.c.b16 %v777, %v775
    %v886 = vpack.c.b16 %v780, %v778
    %v887 = vpack.c.b16 %v781, %v779
    %v888 = vpack.c.b16 %v784, %v782
    %v889 = vpack.c.b16 %v785, %v783
    %v890 = vpack.c.b16 %v788, %v786
    %v891 = vpack.c.b16 %v789, %v787
    %v892 = vpack.c.b16 %v792, %v790
    %v893 = vpack.c.b16 %v793, %v791
    %v894 = vpack.c.b16 %v796, %v794
    %v895 = vpack.c.b16 %v797, %v795
    %v896 = vpack.c.b16 %v800, %v798
    %v897 = vpack.c.b16 %v801, %v799
    %v898 = vpack.c.b16 %v804, %v802
    %v899 = vpack.c.b16 %v805, %v803
    %v900 = vpack.c.b16 %v808, %v806
    %v901 = vpack.c.b16 %v809, %v807
    %v902 = vpack.c.b16 %v812, %v810
    %v903 = vpack.c.b16 %v813, %v811
    %v904 = vpack.c.b16 %v816, %v814
    %v905 = vpack.c.b16 %v817, %v815
    %v906 = vpack.c.b16 %v820, %v818
    %v907 = vpack.c.b16 %v821, %v819
    %v908 = vpack.c.b16 %v824, %v822
    %v909 = vpack.c.b16 %v825, %v823
    %v910 = vpack.c.b16 %v828, %v826
    %v911 = vpack.c.b16 %v829, %v827
    %v912 = vpack.c.b16 %v832, %v830
    %v913 = vpack.c.b16 %v833, %v831
    %v914 = vpack.c.b16 %v836, %v834
    %v915 = vpack.c.b16 %v837, %v835
    %v916 = vpack.c.b16 %v840, %v838
    %v917 = vpack.c.b16 %v841, %v839
    %v918 = vpack.c.b16 %v844, %v842
    %v919 = vpack.c.b16 %v845, %v843
    %v920 = vpack.c.b16 %v848, %v846
    %v921 = vpack.c.b16 %v849, %v847
    %v922 = vpack.c.b16 %v852, %v850
    %v923 = vpack.c.b16 %v853, %v851
    %v924 = vpack.c.b16 %v856, %v854
    %v925 = vpack.c.b16 %v857, %v855
    %v926 = vpack.c.b16 %v860, %v858
    %v927 = vpack.c.b16 %v861, %v859
    %v928 = vpack.c.b16 %v864, %v862
    %v929 = vpack.c.b16 %v865, %v863
    %994 = vmatprep.subr.bf16.mxu0 %v881
    %995 = vmatpush1.bf16.msra.mxu0 %v880
    %996 = vmatprep.subr.bf16.mxu0 %v879
    %997 = vmatpush1.bf16.msra.mxu0 %v878
    %998 = vmatprep.subr.bf16.mxu0 %v877
    %999 = vmatpush1.bf16.msra.mxu0 %v876
    %1000 = vmatprep.subr.bf16.mxu0 %v875
    %1001 = vmatpush1.bf16.msra.mxu0 %v874
    %1002 = vmatprep.subr.bf16.mxu0 %v873
    %1003 = vmatpush1.bf16.msra.mxu0 %v872
    %1004 = vmatprep.subr.bf16.mxu0 %v871
    %1005 = vmatpush1.bf16.msra.mxu0 %v870
    %1006 = vmatprep.subr.bf16.mxu0 %v869
    %1007 = vmatpush1.bf16.msra.mxu0 %v868
    %1008 = vmatprep.subr.bf16.mxu0 %v867
    %1009 = vmatpush1.bf16.msra.mxu0 %v866
    %1010 = vmatprep.subr.bf16.mxu0 %v897
    %1011 = vmatpush2.bf16.msra.mxu0 %v896
    %1012 = vmatprep.subr.bf16.mxu0 %v895
    %1013 = vmatpush2.bf16.msra.mxu0 %v894
    %1014 = vmatprep.subr.bf16.mxu0 %v893
    %1015 = vmatpush2.bf16.msra.mxu0 %v892
    %1016 = vmatprep.subr.bf16.mxu0 %v891
    %1017 = vmatpush2.bf16.msra.mxu0 %v890
    %1018 = vmatprep.subr.bf16.mxu0 %v889
    %1019 = vmatpush2.bf16.msra.mxu0 %v888
    %1020 = vmatprep.subr.bf16.mxu0 %v887
    %1021 = vmatpush2.bf16.msra.mxu0 %v886
    %1022 = vmatprep.subr.bf16.mxu0 %v885
    %1023 = vmatpush2.bf16.msra.mxu0 %v884
    %1024 = vmatprep.subr.bf16.mxu0 %v883
    %1025 = vmatpush2.bf16.msra.mxu0 %v882
    %1026 = vmatprep.mubr.bf16.mxu0 %v595
    %1027 = vmatmul.mubr.bf16.gmra.mxu0 %v594
    %v1028 = vpop.f32.mrf.mxu0
    %v1029 = vadd.f32 %v667, %v1028
    %v1030 = vpop.f32.mrf.mxu0
    %v1031 = vadd.f32 %v671, %v1030
    %v1032 = vpop.f32.mrf.mxu0
    %v1033 = vadd.f32 %v667, %v1032
    %v1034 = vpop.f32.mrf.mxu0
    %v1035 = vadd.f32 %v671, %v1034
    %1036 = vdwg.mxu0
    %1037 = vmatprep.subr.bf16.mxu0 %v913
    %1038 = vmatpush1.bf16.msra.mxu0 %v912
    %1039 = vmatprep.subr.bf16.mxu0 %v911
    %1040 = vmatpush1.bf16.msra.mxu0 %v910
    %1041 = vmatprep.subr.bf16.mxu0 %v909
    %1042 = vmatpush1.bf16.msra.mxu0 %v908
    %1043 = vmatprep.subr.bf16.mxu0 %v907
    %1044 = vmatpush1.bf16.msra.mxu0 %v906
    %1045 = vmatprep.subr.bf16.mxu0 %v905
    %1046 = vmatpush1.bf16.msra.mxu0 %v904
    %1047 = vmatprep.subr.bf16.mxu0 %v903
    %1048 = vmatpush1.bf16.msra.mxu0 %v902
    %1049 = vmatprep.subr.bf16.mxu0 %v901
    %1050 = vmatpush1.bf16.msra.mxu0 %v900
    %1051 = vmatprep.subr.bf16.mxu0 %v899
    %1052 = vmatpush1.bf16.msra.mxu0 %v898
    %1053 = vmatprep.subr.bf16.mxu0 %v929
    %1054 = vmatpush2.bf16.msra.mxu0 %v928
    %1055 = vmatprep.subr.bf16.mxu0 %v927
    %1056 = vmatpush2.bf16.msra.mxu0 %v926
    %1057 = vmatprep.subr.bf16.mxu0 %v925
    %1058 = vmatpush2.bf16.msra.mxu0 %v924
    %1059 = vmatprep.subr.bf16.mxu0 %v923
    %1060 = vmatpush2.bf16.msra.mxu0 %v922
    %1061 = vmatprep.subr.bf16.mxu0 %v921
    %1062 = vmatpush2.bf16.msra.mxu0 %v920
    %1063 = vmatprep.subr.bf16.mxu0 %v919
    %1064 = vmatpush2.bf16.msra.mxu0 %v918
    %1065 = vmatprep.subr.bf16.mxu0 %v917
    %1066 = vmatpush2.bf16.msra.mxu0 %v916
    %1067 = vmatprep.subr.bf16.mxu0 %v915
    %1068 = vmatpush2.bf16.msra.mxu0 %v914
    %1069 = vmatprep.mubr.bf16.mxu0 %v597
    %1070 = vmatmul.mubr.bf16.gmra.mxu0 %v596
    %v1071 = vpop.f32.mrf.mxu0
    %v1072 = vadd.f32 %v1029, %v1071
    %v1073 = vpop.f32.mrf.mxu0
    %v1074 = vadd.f32 %v1031, %v1073
    %v1075 = vpop.f32.mrf.mxu0
    %v1076 = vadd.f32 %v1033, %v1075
    %v1077 = vpop.f32.mrf.mxu0
    %v1078 = vadd.f32 %v1035, %v1077
    %1079 = vdwg.mxu0
    %v1080 = vmax.f32 %v1072, 0.0
    %v1081 = vmax.f32 %v1074, 0.0
    %v1082 = vmax.f32 %v1076, 0.0
    %v1083 = vmax.f32 %v1078, 0.0
    %v1084 = vpack.c.bf16 %v1082, %v1080
    %v1085 = vpack.c.bf16 %v1083, %v1081
    %v1086 = vld [vmem:[#allocation6] sm:$0xf]
    %v1087 = vld [vmem:[#allocation6 + $0x4] sm:$0xf]
    %v1088 = vld [vmem:[#allocation6 + $0x8] sm:$0xf]
    %v1089 = vld [vmem:[#allocation6 + $0xc] sm:$0xf]
    %v1090 = vld [vmem:[#allocation6 + $0x10] sm:$0xf]
    %v1091 = vld [vmem:[#allocation6 + $0x14] sm:$0xf]
    %v1092 = vld [vmem:[#allocation6 + $0x18] sm:$0xf]
    %v1093 = vld [vmem:[#allocation6 + $0x1c] sm:$0xf]
    %v1094 = vld [vmem:[#allocation6 + $0x20] sm:$0xf]
    %v1095 = vld [vmem:[#allocation6 + $0x24] sm:$0xf]
    %v1096 = vld [vmem:[#allocation6 + $0x28] sm:$0xf]
    %v1097 = vld [vmem:[#allocation6 + $0x2c] sm:$0xf]
    %v1098 = vld [vmem:[#allocation6 + $0x30] sm:$0xf]
    %v1099 = vld [vmem:[#allocation6 + $0x34] sm:$0xf]
    %v1100 = vld [vmem:[#allocation6 + $0x38] sm:$0xf]
    %v1101 = vld [vmem:[#allocation6 + $0x3c] sm:$0xf]
    %v1102 = vld [vmem:[#allocation6 + $0x40] sm:$0xf]
    %v1103 = vld [vmem:[#allocation6 + $0x44] sm:$0xf]
    %v1104 = vld [vmem:[#allocation6 + $0x48] sm:$0xf]
    %v1105 = vld [vmem:[#allocation6 + $0x4c] sm:$0xf]
    %v1106 = vld [vmem:[#allocation6 + $0x50] sm:$0xf]
    %v1107 = vld [vmem:[#allocation6 + $0x54] sm:$0xf]
    %v1108 = vld [vmem:[#allocation6 + $0x58] sm:$0xf]
    %v1109 = vld [vmem:[#allocation6 + $0x5c] sm:$0xf]
    %v1110 = vld [vmem:[#allocation6 + $0x60] sm:$0xf]
    %v1111 = vld [vmem:[#allocation6 + $0x64] sm:$0xf]
    %v1112 = vld [vmem:[#allocation6 + $0x68] sm:$0xf]
    %v1113 = vld [vmem:[#allocation6 + $0x6c] sm:$0xf]
    %v1114 = vld [vmem:[#allocation6 + $0x70] sm:$0xf]
    %v1115 = vld [vmem:[#allocation6 + $0x74] sm:$0xf]
    %v1116 = vld [vmem:[#allocation6 + $0x78] sm:$0xf]
    %v1117 = vld [vmem:[#allocation6 + $0x7c] sm:$0xf]
    %v1118 = vld [vmem:[%s6] sm:$0x1]
    %v1120 = vlaneseq
    %v1121 = vshrl.u32 %v1120, 7
    %v1122 = vsub.s32 0, %v1121
    %v1123 = vrot.slane %v1118, %v1122
    %v1157 = vunpack.c.l.b16 %v1086
    %v1158 = vunpack.c.l.b16 %v1087
    %v1159 = vunpack.c.l.b16 %v1088
    %v1160 = vunpack.c.l.b16 %v1089
    %v1161 = vunpack.c.l.b16 %v1090
    %v1162 = vunpack.c.l.b16 %v1091
    %v1163 = vunpack.c.l.b16 %v1092
    %v1164 = vunpack.c.l.b16 %v1093
    %v1165 = vunpack.c.l.b16 %v1094
    %v1166 = vunpack.c.l.b16 %v1095
    %v1167 = vunpack.c.l.b16 %v1096
    %v1168 = vunpack.c.l.b16 %v1097
    %v1169 = vunpack.c.l.b16 %v1098
    %v1170 = vunpack.c.l.b16 %v1099
    %v1171 = vunpack.c.l.b16 %v1100
    %v1172 = vunpack.c.l.b16 %v1101
    %v1173 = vunpack.c.l.b16 %v1102
    %v1174 = vunpack.c.l.b16 %v1103
    %v1175 = vunpack.c.l.b16 %v1104
    %v1176 = vunpack.c.l.b16 %v1105
    %v1177 = vunpack.c.l.b16 %v1106
    %v1178 = vunpack.c.l.b16 %v1107
    %v1179 = vunpack.c.l.b16 %v1108
    %v1180 = vunpack.c.l.b16 %v1109
    %v1181 = vunpack.c.l.b16 %v1110
    %v1182 = vunpack.c.l.b16 %v1111
    %v1183 = vunpack.c.l.b16 %v1112
    %v1184 = vunpack.c.l.b16 %v1113
    %v1185 = vunpack.c.l.b16 %v1114
    %v1186 = vunpack.c.l.b16 %v1115
    %v1187 = vunpack.c.l.b16 %v1116
    %v1188 = vunpack.c.l.b16 %v1117
    %v1189 = vpack.c.b16 %v1158, %v1157
    %v1190 = vpack.c.b16 %v1160, %v1159
    %v1191 = vpack.c.b16 %v1162, %v1161
    %v1192 = vpack.c.b16 %v1164, %v1163
    %v1193 = vpack.c.b16 %v1166, %v1165
    %v1194 = vpack.c.b16 %v1168, %v1167
    %v1195 = vpack.c.b16 %v1170, %v1169
    %v1196 = vpack.c.b16 %v1172, %v1171
    %v1197 = vpack.c.b16 %v1174, %v1173
    %v1198 = vpack.c.b16 %v1176, %v1175
    %v1199 = vpack.c.b16 %v1178, %v1177
    %v1200 = vpack.c.b16 %v1180, %v1179
    %v1201 = vpack.c.b16 %v1182, %v1181
    %v1202 = vpack.c.b16 %v1184, %v1183
    %v1203 = vpack.c.b16 %v1186, %v1185
    %v1204 = vpack.c.b16 %v1188, %v1187
    %1221 = vmatprep.subr.bf16.mxu0 0
    %1222 = vmatpush1.bf16.msra.mxu0 %v1196
    %1223 = vmatprep.subr.bf16.mxu0 0
    %1224 = vmatpush1.bf16.msra.mxu0 %v1195
    %1225 = vmatprep.subr.bf16.mxu0 0
    %1226 = vmatpush1.bf16.msra.mxu0 %v1194
    %1227 = vmatprep.subr.bf16.mxu0 0
    %1228 = vmatpush1.bf16.msra.mxu0 %v1193
    %1229 = vmatprep.subr.bf16.mxu0 0
    %1230 = vmatpush1.bf16.msra.mxu0 %v1192
    %1231 = vmatprep.subr.bf16.mxu0 0
    %1232 = vmatpush1.bf16.msra.mxu0 %v1191
    %1233 = vmatprep.subr.bf16.mxu0 0
    %1234 = vmatpush1.bf16.msra.mxu0 %v1190
    %1235 = vmatprep.subr.bf16.mxu0 0
    %1236 = vmatpush1.bf16.msra.mxu0 %v1189
    %1237 = vmatprep.subr.bf16.mxu0 0
    %1238 = vmatpush2.bf16.msra.mxu0 %v1204
    %1239 = vmatprep.subr.bf16.mxu0 0
    %1240 = vmatpush2.bf16.msra.mxu0 %v1203
    %1241 = vmatprep.subr.bf16.mxu0 0
    %1242 = vmatpush2.bf16.msra.mxu0 %v1202
    %1243 = vmatprep.subr.bf16.mxu0 0
    %1244 = vmatpush2.bf16.msra.mxu0 %v1201
    %1245 = vmatprep.subr.bf16.mxu0 0
    %1246 = vmatpush2.bf16.msra.mxu0 %v1200
    %1247 = vmatprep.subr.bf16.mxu0 0
    %1248 = vmatpush2.bf16.msra.mxu0 %v1199
    %1249 = vmatprep.subr.bf16.mxu0 0
    %1250 = vmatpush2.bf16.msra.mxu0 %v1198
    %1251 = vmatprep.subr.bf16.mxu0 0
    %1252 = vmatpush2.bf16.msra.mxu0 %v1197
    %1253 = vmatprep.mubr.bf16.mxu0 %v1085
    %1254 = vmatmul.mubr.bf16.gmra.mxu0 %v1084
    %v1255 = vpop.f32.mrf.mxu0
    %v1256 = vadd.f32 %v1123, %v1255
    %v1257 = vpop.f32.mrf.mxu0
    %v1258 = vpop.f32.mrf.mxu0
    %v1259 = vadd.f32 %v1123, %v1258
    %v1260 = vpop.f32.mrf.mxu0
    %1261 = vdwg.mxu0
    %v1262 = vmax.f32 %v1256, 0.0
    %v1263 = vmax.f32 %v1259, 0.0
    %v1264 = vpack.c.bf16 %v1263, %v1262
    %v1265 = vld [vmem:[#allocation7] sm:$0xf]
    %v1266 = vld [vmem:[#allocation7 + $0x4] sm:$0xf]
    %v1267 = vld [vmem:[#allocation7 + $0x8] sm:$0xf]
    %v1268 = vld [vmem:[#allocation7 + $0xc] sm:$0xf]
    %v1269 = vld [vmem:[#allocation7 + $0x10] sm:$0xf]
    %v1270 = vld [vmem:[#allocation7 + $0x14] sm:$0xf]
    %v1271 = vld [vmem:[#allocation7 + $0x18] sm:$0xf]
    %v1272 = vld [vmem:[#allocation7 + $0x1c] sm:$0xf]
    %v1273 = vld [vmem:[#allocation7 + $0x20] sm:$0xf]
    %v1274 = vld [vmem:[#allocation7 + $0x24] sm:$0xf]
    %v1275 = vld [vmem:[#allocation7 + $0x28] sm:$0xf]
    %v1276 = vld [vmem:[#allocation7 + $0x2c] sm:$0xf]
    %v1277 = vld [vmem:[#allocation7 + $0x30] sm:$0xf]
    %v1278 = vld [vmem:[#allocation7 + $0x34] sm:$0xf]
    %v1279 = vld [vmem:[#allocation7 + $0x38] sm:$0xf]
    %v1280 = vld [vmem:[#allocation7 + $0x3c] sm:$0xf]
    %v1281 = vld [vmem:[%s8] sm:$0x1]
    %v1283 = vlaneseq
    %v1284 = vshrl.u32 %v1283, 7
    %v1285 = vsub.s32 0, %v1284
    %v1286 = vrot.slane %v1281, %v1285
    %v1304 = vunpack.c.l.b16 %v1265
    %v1305 = vunpack.c.l.b16 %v1266
    %v1306 = vunpack.c.l.b16 %v1267
    %v1307 = vunpack.c.l.b16 %v1268
    %v1308 = vunpack.c.l.b16 %v1269
    %v1309 = vunpack.c.l.b16 %v1270
    %v1310 = vunpack.c.l.b16 %v1271
    %v1311 = vunpack.c.l.b16 %v1272
    %v1312 = vunpack.c.l.b16 %v1273
    %v1313 = vunpack.c.l.b16 %v1274
    %v1314 = vunpack.c.l.b16 %v1275
    %v1315 = vunpack.c.l.b16 %v1276
    %v1316 = vunpack.c.l.b16 %v1277
    %v1317 = vunpack.c.l.b16 %v1278
    %v1318 = vunpack.c.l.b16 %v1279
    %v1319 = vunpack.c.l.b16 %v1280
    %v1320 = vpack.c.b16 %v1305, %v1304
    %v1321 = vpack.c.b16 %v1307, %v1306
    %v1322 = vpack.c.b16 %v1309, %v1308
    %v1323 = vpack.c.b16 %v1311, %v1310
    %v1324 = vpack.c.b16 %v1313, %v1312
    %v1325 = vpack.c.b16 %v1315, %v1314
    %v1326 = vpack.c.b16 %v1317, %v1316
    %v1327 = vpack.c.b16 %v1319, %v1318
    %1336 = vmatprep.subr.bf16.mxu0 0
    %1337 = vmatpush1.bf16.msra.mxu0 %v1327
    %1338 = vmatprep.subr.bf16.mxu0 0
    %1339 = vmatpush1.bf16.msra.mxu0 %v1326
    %1340 = vmatprep.subr.bf16.mxu0 0
    %1341 = vmatpush1.bf16.msra.mxu0 %v1325
    %1342 = vmatprep.subr.bf16.mxu0 0
    %1343 = vmatpush1.bf16.msra.mxu0 %v1324
    %1344 = vmatprep.subr.bf16.mxu0 0
    %1345 = vmatpush1.bf16.msra.mxu0 %v1323
    %1346 = vmatprep.subr.bf16.mxu0 0
    %1347 = vmatpush1.bf16.msra.mxu0 %v1322
    %1348 = vmatprep.subr.bf16.mxu0 0
    %1349 = vmatpush1.bf16.msra.mxu0 %v1321
    %1350 = vmatprep.subr.bf16.mxu0 0
    %1351 = vmatpush1.bf16.msra.mxu0 %v1320
    %1352 = vmatprep.subr.bf16.mxu0 0
    %1353 = vmatpush2.bf16.msra.mxu0 0
    %1354 = vmatprep.subr.bf16.mxu0 0
    %1355 = vmatpush2.bf16.msra.mxu0 0
    %1356 = vmatprep.subr.bf16.mxu0 0
    %1357 = vmatpush2.bf16.msra.mxu0 0
    %1358 = vmatprep.subr.bf16.mxu0 0
    %1359 = vmatpush2.bf16.msra.mxu0 0
    %1360 = vmatprep.subr.bf16.mxu0 0
    %1361 = vmatpush2.bf16.msra.mxu0 0
    %1362 = vmatprep.subr.bf16.mxu0 0
    %1363 = vmatpush2.bf16.msra.mxu0 0
    %1364 = vmatprep.subr.bf16.mxu0 0
    %1365 = vmatpush2.bf16.msra.mxu0 0
    %1366 = vmatprep.subr.bf16.mxu0 0
    %1367 = vmatpush2.bf16.msra.mxu0 0
    %1368 = vmatprep.mubr.bf16.mxu0 0
    %1369 = vmatmul.mubr.bf16.gmra.mxu0 %v1264
    %v1370 = vpop.f32.mrf.mxu0
    %v1371 = vadd.f32 %v1286, %v1370
    %v1372 = vpop.f32.mrf.mxu0
    %v1373 = vpop.f32.mrf.mxu0
    %v1374 = vadd.f32 %v1286, %v1373
    %v1375 = vpop.f32.mrf.mxu0
    %1376 = vdwg.mxu0
    %v1377 = vpack.c.bf16 %v1374, %v1371
    %v1379 = vunpack.c.l.b16 %v1377
    %v1380 = vunpack.c.h.b16 %v1377
    %v1381 = vpack.c.b16 %v1379, %v1379
    %v1382 = vpack.c.b16 %v1380, %v1380
    %1385 = vst [vmem:[%s9] sm:$0xf] %v1381
    %1386 = vst [vmem:[%s9 + $0x4] sm:$0xf] %v1382
    // Predicated region
    $region54: #{pytorch_ann_forward.1} parent=1 // pred_check
      _
    $region55: #{pytorch_ann_forward.1} parent=1 // pred_check_branch
      %1388 = sbr.rel (0) target = $region57
    $region56: #{pytorch_ann_forward.1} parent=1 // pred_region
      _
    $region57: #{pytorch_ann_forward.1} parent=1 // pred_fallthru
      _
    // Predicated region
    $region58: #{pytorch_ann_forward.1} parent=1 // pred_check
      _
    $region59: #{pytorch_ann_forward.1} parent=1 // pred_check_branch
      %1390 = sbr.rel (0) target = $region61
    $region60: #{pytorch_ann_forward.1} parent=1 // pred_region
      _
    $region61: #{pytorch_ann_forward.1} parent=1 // pred_fallthru
      _
    %1391 = vsyncpa [#allocation3], 1
    %1392 = vsyncpa [#allocation5], 1
    %1393 = vsyncpa [#allocation8], 1

</llo_original>
